<compile_context>
chip_gen: v5e
topology: v5e:2x2
jax: 0.10.0
libtpu: 0.0.40
codegen_flags: <defaults>
</compile_context>

<pallas_src>
import functools

import jax
import jax.numpy as jnp
from jax.experimental import pallas as pl
from jax.experimental.pallas import tpu as pltpu

_SQRT_2_OVER_PI = 0.7978845608028654


def _round_up(x, m):
    return ((x + m - 1) // m) * m


def _approx_gelu_f32(h):
    """0.5*h*(1+tanh(sqrt(2/pi)*(h+0.044715 h^3))), tanh arg clamped to [-50,50]."""
    h2 = h * h
    term = jnp.float32(_SQRT_2_OVER_PI) * (h + jnp.float32(0.044715) * h * h2)
    term = jnp.clip(term, -50.0, 50.0)
    return jnp.float32(0.5) * h * (jnp.float32(1.0) + jnp.tanh(term))


def _ffn_partial(x_ref, w1_ref, b1_ref, w2_ref, cast_bf16):
    """Linear1 + ApproxGELU + partial Linear2 for one (row tile, d_ff slice)."""
    x = x_ref[...]
    w1 = w1_ref[...]
    w2 = w2_ref[...]
    if cast_bf16:
        # Native MXU operand dtype on v7x (bf16 operands, f32 accumulation).
        x = x.astype(jnp.bfloat16)
        w1 = w1.astype(jnp.bfloat16)
        w2 = w2.astype(jnp.bfloat16)
    h = jnp.dot(x, w1, preferred_element_type=jnp.float32)
    h = h + b1_ref[...].astype(jnp.float32)
    a = _approx_gelu_f32(h)
    a = a.astype(jnp.bfloat16 if cast_bf16 else w2.dtype)
    return jnp.dot(a, w2, preferred_element_type=jnp.float32)


def _ffn_kernel_accout(x_ref, w1_ref, b1_ref, w2_ref, b2_ref, o_ref, *, cast_bf16):
    """f32-output variant: accumulate directly into the resident output block."""
    j = pl.program_id(1)
    partial = _ffn_partial(x_ref, w1_ref, b1_ref, w2_ref, cast_bf16)

    @pl.when(j == 0)
    def _():
        # Fuse bias2 into the first partial: no zero-init RMW, no finalize add.
        o_ref[...] = partial + b2_ref[...].astype(jnp.float32)

    @pl.when(j != 0)
    def _():
        o_ref[...] += partial


def _ffn_kernel_scratch(x_ref, w1_ref, b1_ref, w2_ref, b2_ref, o_ref, acc_ref, *,
                        cast_bf16):
    """Generic variant (e.g. bf16 output): f32 VMEM accumulator + final cast."""
    j = pl.program_id(1)
    partial = _ffn_partial(x_ref, w1_ref, b1_ref, w2_ref, cast_bf16)

    @pl.when(j == 0)
    def _():
        acc_ref[...] = partial + b2_ref[...].astype(jnp.float32)

    @pl.when(j != 0)
    def _():
        acc_ref[...] += partial

    @pl.when(j == pl.num_programs(1) - 1)
    def _():
        o_ref[...] = acc_ref[...].astype(o_ref.dtype)


def _vmem_cap_bytes():
    """~75% of physical VMEM (48 MiB on v7x, ~96 MiB on v5e/v6e)."""
    try:
        cap = int(pltpu.get_tpu_info().vmem_capacity_bytes)
    except Exception:
        cap = 64 << 20  # conservative (v7x-sized) fallback
    return (cap * 3) // 4


def _vmem_estimate(tm, tf, dmp, in_bytes, w_bytes, out_bytes):
    """Rough scoped-VMEM footprint for one tiling (double-buffered DMAs)."""
    est = 2 * tm * dmp * in_bytes          # x row tile
    est += 2 * dmp * tf * w_bytes          # W1 column slice
    est += 2 * tf * w_bytes                # b1 slice
    est += 2 * tf * dmp * w_bytes          # W2 row slice
    est += 2 * dmp * w_bytes               # b2
    est += 2 * tm * dmp * out_bytes        # output tile
    est += tm * dmp * 4                    # f32 accumulator (scratch or resident out)
    est += 2 * tm * tf * 4                 # h / a f32 intermediates
    return est


def prepare_ffn_params(w1, b1, w2, b2, *, tf=1024):
    """Pad weights/biases ONCE at init (lane-dense 128 multiples; d_ff to a
    multiple of the d_ff slice). No-op when already aligned. Returns
    (params dict, tf_eff) where tf_eff must be passed to feed_forward_block."""
    d_model, d_ff = w1.shape
    d_model_p = _round_up(d_model, 128)
    tf_eff = min(tf, _round_up(d_ff, 128))
    d_ff_p = _round_up(d_ff, tf_eff)

    if (d_model_p, d_ff_p) != (d_model, d_ff):
        w1 = jnp.pad(w1, ((0, d_model_p - d_model), (0, d_ff_p - d_ff)))
        w2 = jnp.pad(w2, ((0, d_ff_p - d_ff), (0, d_model_p - d_model)))
    if d_ff_p != d_ff:
        b1 = jnp.pad(b1, (0, d_ff_p - d_ff))
    if d_model_p != d_model:
        b2 = jnp.pad(b2, (0, d_model_p - d_model))

    params = {
        "w1": w1,                          # (d_model_p, d_ff_p)
        "b1": b1.reshape(1, d_ff_p),
        "w2": w2,                          # (d_ff_p, d_model_p)
        "b2": b2.reshape(1, d_model_p),
    }
    return params, tf_eff


@functools.partial(jax.jit, static_argnames=("tm", "tf", "cast_bf16"))
def feed_forward_block(x, params, *, tm=512, tf=1024, cast_bf16=False):
    """x: (..., d_model) -> (..., d_model). Params from prepare_ffn_params."""
    if x.shape[0] == 0 or x.size == 0:
        raise RuntimeError("Tensor has no data (empty batch dimension)")

    w1_p, b1_p, w2_p, b2_p = params["w1"], params["b1"], params["w2"], params["b2"]
    d_model = x.shape[-1]
    d_model_p, d_ff_p = w1_p.shape
    tf_eff = min(tf, d_ff_p)
    assert d_ff_p % tf_eff == 0, "tf must match the value used in prepare_ffn_params"

    orig_shape = x.shape
    x2d = x.reshape(-1, d_model)
    M = x2d.shape[0]

    # Row alignment: bf16 packs 2 rows / sublane -> align to 16; f32 -> 8.
    row_align = 16 if x.dtype == jnp.bfloat16 else 8
    M_a = _round_up(M, row_align)
    tm_eff = _round_up(min(tm, M_a), row_align)

    in_b = jnp.dtype(x.dtype).itemsize
    w_b = jnp.dtype(w1_p.dtype).itemsize

    # Generation-aware VMEM budget; shrink the row tile if the estimate overshoots.
    cap = _vmem_cap_bytes()
    while (_vmem_estimate(tm_eff, tf_eff, d_model_p, in_b, w_b, in_b) > cap
           and tm_eff > row_align):
        tm_eff = max(row_align, _round_up(tm_eff // 2, row_align))

    # Ensure >=2 row tiles when possible so the parallel axis shards across
    # v7x's two TensorCores (harmless on single-TC chips).
    if M_a > row_align and _round_up(M_a, tm_eff) // tm_eff < 2:
        tm_eff = _round_up((M_a + 1) // 2, row_align)

    M_p = _round_up(M, tm_eff)

    # Only the activation tile is padded in the hot path (weights padded at init).
    if (M_p, d_model_p) != (M, d_model):
        x2d = jnp.pad(x2d, ((0, M_p - M), (0, d_model_p - d_model)))

    est = _vmem_estimate(tm_eff, tf_eff, d_model_p, in_b, w_b, in_b)
    vmem_limit = int(max(32 << 20, min(2 * est, cap)))

    grid = (M_p // tm_eff, d_ff_p // tf_eff)

    f32_out = x.dtype == jnp.float32
    if f32_out:
        kernel = functools.partial(_ffn_kernel_accout, cast_bf16=cast_bf16)
        scratch_shapes = []
    else:
        kernel = functools.partial(_ffn_kernel_scratch, cast_bf16=cast_bf16)
        scratch_shapes = [pltpu.VMEM((tm_eff, d_model_p), jnp.float32)]

    out = pl.pallas_call(
        kernel,
        out_shape=jax.ShapeDtypeStruct((M_p, d_model_p), x.dtype),
        grid_spec=pltpu.PrefetchScalarGridSpec(
            num_scalar_prefetch=0,
            grid=grid,
            in_specs=[
                pl.BlockSpec((tm_eff, d_model_p), lambda i, j: (i, 0)),   # x tile (resident over j)
                pl.BlockSpec((d_model_p, tf_eff), lambda i, j: (0, j)),   # W1 column slice
                pl.BlockSpec((1, tf_eff), lambda i, j: (0, j)),           # b1 slice
                pl.BlockSpec((tf_eff, d_model_p), lambda i, j: (j, 0)),   # W2 row slice
                pl.BlockSpec((1, d_model_p), lambda i, j: (0, 0)),        # b2
            ],
            out_specs=pl.BlockSpec((tm_eff, d_model_p), lambda i, j: (i, 0)),
            scratch_shapes=scratch_shapes,
        ),
        compiler_params=pltpu.CompilerParams(
            dimension_semantics=("parallel", "arbitrary"),
            vmem_limit_bytes=vmem_limit,
        ),
    )(x2d, w1_p, b1_p, w2_p, b2_p)

    out = out[:M, :d_model]
    return out.reshape(orig_shape)


def feed_forward_ref(x, w1, b1, w2, b2):
    """Pure-JAX reference mirroring the PyTorch forward (exp-based tanh + clamp)."""
    h = jnp.matmul(x, w1) + b1
    term = jnp.sqrt(2.0 / jnp.pi) * (h + 0.044715 * h ** 3)
    term = jnp.clip(term, -50.0, 50.0)
    t = (jnp.exp(term) - jnp.exp(-term)) / (jnp.exp(term) + jnp.exp(-term))
    a = 0.5 * h * (1.0 + t)
    return jnp.matmul(a, w2) + b2


if __name__ == "__main__":
    # Small shapes consistent with the module: (batch, seq, d_model)
    batch, seq, d_model, d_ff = 2, 8, 32, 64

    key = jax.random.PRNGKey(0)
    kx, kw1, kw2 = jax.random.split(key, 3)

    x = jax.random.normal(kx, (batch, seq, d_model), dtype=jnp.float32)

    # LinearLayer params: weights ~ randn(input_dim, output_dim), bias = zeros
    w1 = jax.random.normal(kw1, (d_model, d_ff), dtype=jnp.float32)
    b1 = jnp.zeros((d_ff,), dtype=jnp.float32)
    w2 = jax.random.normal(kw2, (d_ff, d_model), dtype=jnp.float32)
    b2 = jnp.zeros((d_model,), dtype=jnp.float32)

    # Pad weights once at init (not in the hot path).
    params, tf_eff = prepare_ffn_params(w1, b1, w2, b2, tf=1024)

    out = feed_forward_block(x, params, tm=512, tf=tf_eff, cast_bf16=False)
    out = jax.block_until_ready(out)

    ref = feed_forward_ref(x, w1, b1, w2, b2)
    assert out.shape == (batch, seq, d_model)
    assert jnp.allclose(out, ref, atol=1e-3, rtol=1e-3), "mismatch vs reference"

    print("KERNEL_OK")
</pallas_src>

<mosaic_0001>
module attributes {stable_mosaic.version = 11 : i64} {
  func.func @_ffn_kernel_accout(%arg0: i32, %arg1: i32, %arg2: memref<8x128xf32, #tpu.memory_space<vmem>>, %arg3: memref<128x128xf32, #tpu.memory_space<vmem>>, %arg4: memref<1x128xf32, #tpu.memory_space<vmem>>, %arg5: memref<128x128xf32, #tpu.memory_space<vmem>>, %arg6: memref<1x128xf32, #tpu.memory_space<vmem>>, %arg7: memref<8x128xf32, #tpu.memory_space<vmem>>) attributes {dimension_semantics = [#tpu.dimension_semantics<parallel>, #tpu.dimension_semantics<arbitrary>], iteration_bounds = array<i64: 2, 1>, scalar_prefetch = 0 : i64, scratch_operands = 0 : i64, tpu.core_type = #tpu.core_type<tc>, window_params = [{transform_indices = @transform_0, window_bounds = array<i64: 8, 128>}, {transform_indices = @transform_1, window_bounds = array<i64: 128, 128>}, {transform_indices = @transform_2, window_bounds = array<i64: 1, 128>}, {transform_indices = @transform_3, window_bounds = array<i64: 128, 128>}, {pipeline_mode = #tpu.pipeline_mode<synchronous>, transform_indices = @transform_4, window_bounds = array<i64: 1, 128>}, {transform_indices = @transform_5, window_bounds = array<i64: 8, 128>}]} {
    %c0 = arith.constant 0 : index
    %c0_0 = arith.constant 0 : index
    %0 = vector.load %arg2[%c0, %c0_0] : memref<8x128xf32, #tpu.memory_space<vmem>>, vector<8x128xf32>
    %c0_1 = arith.constant 0 : index
    %c0_2 = arith.constant 0 : index
    %1 = vector.load %arg3[%c0_1, %c0_2] : memref<128x128xf32, #tpu.memory_space<vmem>>, vector<128x128xf32>
    %c0_3 = arith.constant 0 : index
    %c0_4 = arith.constant 0 : index
    %2 = vector.load %arg5[%c0_3, %c0_4] : memref<128x128xf32, #tpu.memory_space<vmem>>, vector<128x128xf32>
    %cst = arith.constant dense<0.000000e+00> : vector<8x128xf32>
    %3 = tpu.matmul %0, %1, %cst {dimension_numbers = #tpu.dot_dimension_numbers<[1], [0], [0], [1], [0, 0, 1, 1], [], []>} : vector<8x128xf32>, vector<128x128xf32>, vector<8x128xf32> -> vector<8x128xf32>
    %c0_5 = arith.constant 0 : index
    %c0_6 = arith.constant 0 : index
    %4 = vector.load %arg4[%c0_5, %c0_6] : memref<1x128xf32, #tpu.memory_space<vmem>>, vector<1x128xf32>
    %5 = vector.broadcast %4 : vector<1x128xf32> to vector<8x128xf32>
    %6 = arith.addf %3, %5 : vector<8x128xf32>
    %7 = arith.mulf %6, %6 : vector<8x128xf32>
    %cst_7 = arith.constant 4.471500e-02 : f32
    %8 = vector.broadcast %cst_7 : f32 to vector<8x128xf32>
    %9 = arith.mulf %8, %6 : vector<8x128xf32>
    %10 = arith.mulf %9, %7 : vector<8x128xf32>
    %11 = arith.addf %6, %10 : vector<8x128xf32>
    %cst_8 = arith.constant 0.797884583 : f32
    %12 = vector.broadcast %cst_8 : f32 to vector<8x128xf32>
    %13 = arith.mulf %12, %11 : vector<8x128xf32>
    %cst_9 = arith.constant -5.000000e+01 : f32
    %cst_10 = arith.constant 5.000000e+01 : f32
    %14 = vector.broadcast %cst_9 : f32 to vector<8x128xf32>
    %15 = arith.maximumf %14, %13 : vector<8x128xf32>
    %16 = vector.broadcast %cst_10 : f32 to vector<8x128xf32>
    %17 = arith.minimumf %16, %15 : vector<8x128xf32>
    %cst_11 = arith.constant 5.000000e-01 : f32
    %18 = vector.broadcast %cst_11 : f32 to vector<8x128xf32>
    %19 = arith.mulf %18, %6 : vector<8x128xf32>
    %20 = math.tanh %17 : vector<8x128xf32>
    %cst_12 = arith.constant 1.000000e+00 : f32
    %21 = vector.broadcast %cst_12 : f32 to vector<8x128xf32>
    %22 = arith.addf %21, %20 : vector<8x128xf32>
    %23 = arith.mulf %19, %22 : vector<8x128xf32>
    %cst_13 = arith.constant dense<0.000000e+00> : vector<8x128xf32>
    %24 = tpu.matmul %23, %2, %cst_13 {dimension_numbers = #tpu.dot_dimension_numbers<[1], [0], [0], [1], [0, 0, 1, 1], [], []>} : vector<8x128xf32>, vector<128x128xf32>, vector<8x128xf32> -> vector<8x128xf32>
    %c0_i32 = arith.constant 0 : i32
    %25 = arith.cmpi eq, %arg1, %c0_i32 : i32
    %26 = arith.extui %25 : i1 to i32
    %c0_i32_14 = arith.constant 0 : i32
    %27 = arith.cmpi ne, %26, %c0_i32_14 : i32
    scf.if %27 {
      %c0_17 = arith.constant 0 : index
      %c0_18 = arith.constant 0 : index
      %31 = vector.load %arg6[%c0_17, %c0_18] : memref<1x128xf32, #tpu.memory_space<vmem>>, vector<1x128xf32>
      %32 = vector.broadcast %31 : vector<1x128xf32> to vector<8x128xf32>
      %33 = arith.addf %24, %32 : vector<8x128xf32>
      %c0_19 = arith.constant 0 : index
      %c0_20 = arith.constant 0 : index
      %34 = vector.load %arg7[%c0_19, %c0_20] : memref<8x128xf32, #tpu.memory_space<vmem>>, vector<8x128xf32>
      tpu.vector_store %arg7[%c0_19, %c0_20], %33 {strides = array<i32>} : memref<8x128xf32, #tpu.memory_space<vmem>>, vector<8x128xf32>,
    } else {
    }
    %c0_i32_15 = arith.constant 0 : i32
    %28 = arith.cmpi ne, %arg1, %c0_i32_15 : i32
    %29 = arith.extui %28 : i1 to i32
    %c0_i32_16 = arith.constant 0 : i32
    %30 = arith.cmpi ne, %29, %c0_i32_16 : i32
    scf.if %30 {
      %c0_17 = arith.constant 0 : index
      %c0_18 = arith.constant 0 : index
      %31 = vector.load %arg7[%c0_17, %c0_18] : memref<8x128xf32, #tpu.memory_space<vmem>>, vector<8x128xf32>
      %32 = arith.addf %31, %24 : vector<8x128xf32>
      %c0_19 = arith.constant 0 : index
      %c0_20 = arith.constant 0 : index
      %33 = vector.load %arg7[%c0_19, %c0_20] : memref<8x128xf32, #tpu.memory_space<vmem>>, vector<8x128xf32>
      tpu.vector_store %arg7[%c0_19, %c0_20], %32 {strides = array<i32>} : memref<8x128xf32, #tpu.memory_space<vmem>>, vector<8x128xf32>,
    } else {
    }
    return
  }
  func.func @transform_0(%arg0: i32, %arg1: i32) -> (i32, i32) {
    %c0_i32 = arith.constant 0 : i32
    %c0_i32_0 = arith.constant 0 : i32
    return %arg0, %c0_i32 : i32, i32
  }
  func.func @transform_1(%arg0: i32, %arg1: i32) -> (i32, i32) {
    %c0_i32 = arith.constant 0 : i32
    %c0_i32_0 = arith.constant 0 : i32
    return %c0_i32, %arg1 : i32, i32
  }
  func.func @transform_2(%arg0: i32, %arg1: i32) -> (i32, i32) {
    %c0_i32 = arith.constant 0 : i32
    %c0_i32_0 = arith.constant 0 : i32
    return %c0_i32, %arg1 : i32, i32
  }
  func.func @transform_3(%arg0: i32, %arg1: i32) -> (i32, i32) {
    %c0_i32 = arith.constant 0 : i32
    %c0_i32_0 = arith.constant 0 : i32
    return %arg1, %c0_i32 : i32, i32
  }
  func.func @transform_4(%arg0: i32, %arg1: i32) -> (i32, i32) {
    %c0_i32 = arith.constant 0 : i32
    %c0_i32_0 = arith.constant 0 : i32
    %c0_i32_1 = arith.constant 0 : i32
    return %c0_i32, %c0_i32_0 : i32, i32
  }
  func.func @transform_5(%arg0: i32, %arg1: i32) -> (i32, i32) {
    %c0_i32 = arith.constant 0 : i32
    %c0_i32_0 = arith.constant 0 : i32
    return %arg0, %c0_i32 : i32, i32
  }
}

</mosaic_0001>

<llo_original>
// kernel: feed_forward_block.1
$region0: #{feed_forward_block.1}
  #allocation0 [shape = 'u32[]', space=smem, size = 0x4, offset = 0x4, fixed_abs, tag = 'smem constant byte address 0x4 - core index']
  #allocation1 [shape = 'u32[72,128]{1,0:T(1,128)}', space=vmem, size = 0x9000, scoped, tag = 'internal scratch']
  %s0 = inlined_call_operand.vmem [shape: f32[16,128], index: 0, kind: input, shape index: {}]
  %s1 = inlined_call_operand.hbm [shape: f32[128,128], index: 1, kind: input, shape index: {}]
  %s2 = inlined_call_operand.vmem [shape: f32[1,128], index: 2, kind: input, shape index: {}]
  %s3 = inlined_call_operand.hbm [shape: f32[128,128], index: 3, kind: input, shape index: {}]
  %s4 = inlined_call_operand.vmem [shape: f32[1,128], index: 4, kind: input, shape index: {}]
  %s5 = inlined_call_operand.vmem [shape: f32[16,128], index: 5, kind: output, shape index: {}]
  %s6 = sld [smem:[#allocation0]]
  $region69: #{feed_forward_block.1} parent=0
    _
  %s8 = ssub.s32 1, %s6
  %s9 = scalar_select 0, %s8, %s6
  $region1: #{feed_forward_block.1} parent=0
    #allocation2 [shape = 'u8[65536]{0}', space=vmem, size = 0x10000, scoped, tag = 'input window, operand 1, single buffered']
    #allocation3 [shape = 's32[2]{0}', space=sflag, size = 0x8, scoped, tag = 'scoped memory for feed_forward_block.1']
    #allocation4 [shape = 'u8[65536]{0}', space=vmem, size = 0x10000, scoped, tag = 'input window, operand 3, single buffered']
    #allocation5 [shape = 's32[1]{0}', space=sflag, size = 0x4, scoped, tag = 'scoped memory for feed_forward_block.1']
    %10 = vsyncpa [#allocation3], 0
    %11 = vsyncpa [#allocation5], 0
    loop: start=0, step=1, limit=4
    $region2: #{feed_forward_block.1} parent=1 // loop_pre_header
      _
    $region3: #{feed_forward_block.1} parent=1 // loop_header
      %s13 = sphi 0, %s17
      %p14 = scmp.ge.s32.totalorder %s13, 4
      %s20 = sphi 0, %s32
      %s21 = sphi 0, %s28
      %s22 = sphi 0, %s20
      %s23 = sphi 0, %s21
      %s24 = sphi 0, %s22
      %s25 = sphi 0, %s23
      %s35 = sphi 0, %s37
      %s38 = sphi 0, %s35
      %s39 = sphi 0, %s38
      %s55 = sphi 0, %s39
      %s61 = sphi 0, %s63
      %s64 = sphi 0, %s61
      %s65 = sphi 0, %s64
      %s81 = sphi 0, %s65
      %s87 = sphi 0, %s89
      %s90 = sphi 0, %s87
      %s91 = sphi 0, %s90
      %s107 = sphi 0, %s91
      %s113 = sphi 0, %s115
      %s116 = sphi 0, %s113
      %s117 = sphi 0, %s116
      %s133 = sphi 0, %s117
      %s137 = sphi 0, %s137
      %s139 = sphi 0, %s137
      %s140 = sphi 0, %s139
      %s154 = sphi 0, %s140
      %s160 = sphi 0, %s162
      %s163 = sphi 0, %s160
      %s164 = sphi 0, %s163
      %s180 = sphi 0, %s164
    $region4: #{feed_forward_block.1} parent=1 // loop_header_branch
      %16 = sbr.rel (%p14) target = $region8
    $region5: #{feed_forward_block.1} parent=1 // loop_body
      %s18 = ssub.s32 %s13, 1
      %s19 = ssub.s32 %s13, 2
      %s26 = sadd.s32 1, %s21
      %p27 = scmp.ge.s32.totalorder %s26, 1
      %s28 = scalar_select %p27, 0, %s26
      %s29 = sadd.s32 1, %s20
      %s30 = scalar_select %p27, %s29, %s20
      %p31 = scmp.ge.s32.totalorder %s30, 2
      %s32 = scalar_select %p31, 0, %s30
      %s33 = ssub.s32 %s20, %s32
      %p34 = scmp.eq.s32.totalorder %s33, 0
      %s36 = sadd.s32 %s35, 1
      %s37 = scalar_select %p34, %s35, %s36
      %p40 = pneg %p34
      %p41 = scmp.eq.s32.totalorder %s13, 1
      %p42 = por %p40, %p41
      %p43 = scmp.ne.s32.totalorder %s35, %s38
      %p44 = scmp.eq.s32.totalorder %s13, 0
      %p45 = por %p43, %p44
      %p46 = scmp.ne.s32.totalorder %s35, %s38
      %p47 = scmp.eq.s32.totalorder %s18, 1
      %p48 = por %p46, %p47
      %p49 = scmp.ne.s32.totalorder %s38, %s39
      %p50 = scmp.eq.s32.totalorder %s18, 0
      %p51 = por %p49, %p50
      %p52 = scmp.ne.s32.totalorder %s38, %s39
      %p53 = scmp.eq.s32.totalorder %s19, 1
      %p54 = por %p52, %p53
      %p56 = scmp.ne.s32.totalorder %s39, %s55
      %p57 = scmp.eq.s32.totalorder %s19, 0
      %p58 = por %p56, %p57
      %s59 = ssub.s32 %s21, %s28
      %p60 = scmp.eq.s32.totalorder %s59, 0
      %s62 = sadd.s32 %s61, 1
      %s63 = scalar_select %p60, %s61, %s62
      %p66 = pneg %p60
      %p67 = scmp.eq.s32.totalorder %s13, 1
      %p68 = por %p66, %p67
      %p69 = scmp.ne.s32.totalorder %s61, %s64
      %p70 = scmp.eq.s32.totalorder %s13, 0
      %p71 = por %p69, %p70
      %p72 = scmp.ne.s32.totalorder %s61, %s64
      %p73 = scmp.eq.s32.totalorder %s18, 1
      %p74 = por %p72, %p73
      %p75 = scmp.ne.s32.totalorder %s64, %s65
      %p76 = scmp.eq.s32.totalorder %s18, 0
      %p77 = por %p75, %p76
      %p78 = scmp.ne.s32.totalorder %s64, %s65
      %p79 = scmp.eq.s32.totalorder %s19, 1
      %p80 = por %p78, %p79
      %p82 = scmp.ne.s32.totalorder %s65, %s81
      %p83 = scmp.eq.s32.totalorder %s19, 0
      %p84 = por %p82, %p83
      %s85 = ssub.s32 %s21, %s28
      %p86 = scmp.eq.s32.totalorder %s85, 0
      %s88 = sadd.s32 %s87, 1
      %s89 = scalar_select %p86, %s87, %s88
      %p92 = pneg %p86
      %p93 = scmp.eq.s32.totalorder %s13, 1
      %p94 = por %p92, %p93
      %p95 = scmp.ne.s32.totalorder %s87, %s90
      %p96 = scmp.eq.s32.totalorder %s13, 0
      %p97 = por %p95, %p96
      %p98 = scmp.ne.s32.totalorder %s87, %s90
      %p99 = scmp.eq.s32.totalorder %s18, 1
      %p100 = por %p98, %p99
      %p101 = scmp.ne.s32.totalorder %s90, %s91
      %p102 = scmp.eq.s32.totalorder %s18, 0
      %p103 = por %p101, %p102
      %p104 = scmp.ne.s32.totalorder %s90, %s91
      %p105 = scmp.eq.s32.totalorder %s19, 1
      %p106 = por %p104, %p105
      %p108 = scmp.ne.s32.totalorder %s91, %s107
      %p109 = scmp.eq.s32.totalorder %s19, 0
      %p110 = por %p108, %p109
      %s111 = ssub.s32 %s21, %s28
      %p112 = scmp.eq.s32.totalorder %s111, 0
      %s114 = sadd.s32 %s113, 1
      %s115 = scalar_select %p112, %s113, %s114
      %p118 = pneg %p112
      %p119 = scmp.eq.s32.totalorder %s13, 1
      %p120 = por %p118, %p119
      %p121 = scmp.ne.s32.totalorder %s113, %s116
      %p122 = scmp.eq.s32.totalorder %s13, 0
      %p123 = por %p121, %p122
      %p124 = scmp.ne.s32.totalorder %s113, %s116
      %p125 = scmp.eq.s32.totalorder %s18, 1
      %p126 = por %p124, %p125
      %p127 = scmp.ne.s32.totalorder %s116, %s117
      %p128 = scmp.eq.s32.totalorder %s18, 0
      %p129 = por %p127, %p128
      %p130 = scmp.ne.s32.totalorder %s116, %s117
      %p131 = scmp.eq.s32.totalorder %s19, 1
      %p132 = por %p130, %p131
      %p134 = scmp.ne.s32.totalorder %s117, %s133
      %p135 = scmp.eq.s32.totalorder %s19, 0
      %p136 = por %p134, %p135
      %s138 = sadd.s32 %s137, 1
      %p141 = scmp.eq.s32.totalorder %s13, 1
      %p142 = scmp.ne.s32.totalorder %s137, %s139
      %p143 = scmp.eq.s32.totalorder %s13, 0
      %p144 = por %p142, %p143
      %p145 = scmp.ne.s32.totalorder %s137, %s139
      %p146 = scmp.eq.s32.totalorder %s18, 1
      %p147 = por %p145, %p146
      %p148 = scmp.ne.s32.totalorder %s139, %s140
      %p149 = scmp.eq.s32.totalorder %s18, 0
      %p150 = por %p148, %p149
      %p151 = scmp.ne.s32.totalorder %s139, %s140
      %p152 = scmp.eq.s32.totalorder %s19, 1
      %p153 = por %p151, %p152
      %p155 = scmp.ne.s32.totalorder %s140, %s154
      %p156 = scmp.eq.s32.totalorder %s19, 0
      %p157 = por %p155, %p156
      %s158 = ssub.s32 %s20, %s32
      %p159 = scmp.eq.s32.totalorder %s158, 0
      %s161 = sadd.s32 %s160, 1
      %s162 = scalar_select %p159, %s160, %s161
      %p165 = pneg %p159
      %p166 = scmp.eq.s32.totalorder %s13, 1
      %p167 = por %p165, %p166
      %p168 = scmp.ne.s32.totalorder %s160, %s163
      %p169 = scmp.eq.s32.totalorder %s13, 0
      %p170 = por %p168, %p169
      %p171 = scmp.ne.s32.totalorder %s160, %s163
      %p172 = scmp.eq.s32.totalorder %s18, 1
      %p173 = por %p171, %p172
      %p174 = scmp.ne.s32.totalorder %s163, %s164
      %p175 = scmp.eq.s32.totalorder %s18, 0
      %p176 = por %p174, %p175
      %p177 = scmp.ne.s32.totalorder %s163, %s164
      %p178 = scmp.eq.s32.totalorder %s19, 1
      %p179 = por %p177, %p178
      %p181 = scmp.ne.s32.totalorder %s164, %s180
      %p182 = scmp.eq.s32.totalorder %s19, 0
      %p183 = por %p181, %p182
      %p184 = scmp.le.s32.totalorder 1, %s13
      %p185 = scmp.lt.s32.totalorder %s13, 3
      %p186 = pnand %p184, %p185
      %p187 = pneg %p186
      // Predicated region
      $region9: #{feed_forward_block.1} parent=5 // pred_check
        _
      $region10: #{feed_forward_block.1} parent=5 // pred_check_branch
        %189 = sbr.rel (%p186) target = $region12
      $region11: #{feed_forward_block.1} parent=5 // pred_region
        %s190 = ssub.s32 %s13, 1
        // Predicated region
        $region13: #{feed_forward_block.1} parent=11 // pred_check
          %p191 = pneg %p77
        $region14: #{feed_forward_block.1} parent=11 // pred_check_branch
          %193 = sbr.rel (%p191) target = $region16
        $region15: #{feed_forward_block.1} parent=11 // pred_region
          %195 = vsyncadd [#allocation3], 0
          %s196 = smul.addr %s23, 8
          %s197 = scalar_lea.hbm %s1, %s196
          %s198 = sshll.u32 %s197, 4
          %s199 = int_to_ptr.hbm [resolvable:$true] %s198
          %s200 = sshll.u32 [#allocation2], 4
          %s201 = int_to_ptr.vmem [resolvable:$true] %s200
          %206 = dma.hbm_to_vmem [thread:$0]  %s199, 2048, %s201, [#allocation3], 128, 128, 8
        $region16: #{feed_forward_block.1} parent=11 // pred_fallthru
          _
        // Predicated region
        $region17: #{feed_forward_block.1} parent=11 // pred_check
          %p207 = pneg %p103
        $region18: #{feed_forward_block.1} parent=11 // pred_check_branch
          %209 = sbr.rel (%p207) target = $region20
        $region19: #{feed_forward_block.1} parent=11 // pred_region
          %p210 = scmp.lt.s32.totalorder %s23, 0
          %s211 = scalar_select %p210, %s23, 0
          %s212 = scalar_lea.vmem %s2, %s211
        $region20: #{feed_forward_block.1} parent=11 // pred_fallthru
          _
        // Predicated region
        $region21: #{feed_forward_block.1} parent=11 // pred_check
          %p213 = pneg %p129
        $region22: #{feed_forward_block.1} parent=11 // pred_check_branch
          %215 = sbr.rel (%p213) target = $region24
        $region23: #{feed_forward_block.1} parent=11 // pred_region
          %s216 = smul.u32 16, %s23
          %218 = vsyncadd [#allocation5], 0
          %s219 = smul.addr %s216, 8
          %s220 = scalar_lea.hbm %s3, %s219
          %s221 = sshll.u32 %s220, 4
          %s222 = int_to_ptr.hbm [resolvable:$true] %s221
          %s223 = sshll.u32 [#allocation4], 4
          %s224 = int_to_ptr.vmem [resolvable:$true] %s223
          %229 = dma.hbm_to_vmem [thread:$0]  %s222, 2048, %s224, [#allocation5], 128, 128, 8
        $region24: #{feed_forward_block.1} parent=11 // pred_fallthru
          _
        // Predicated region
        $region25: #{feed_forward_block.1} parent=11 // pred_check
          %p230 = pneg %p150
        $region26: #{feed_forward_block.1} parent=11 // pred_check_branch
          %232 = sbr.rel (%p230) target = $region28
        $region27: #{feed_forward_block.1} parent=11 // pred_region
          _
        $region28: #{feed_forward_block.1} parent=11 // pred_fallthru
          _
      $region12: #{feed_forward_block.1} parent=5 // pred_fallthru
        _
      %p233 = scmp.lt.s32.totalorder %s13, 2
      // Predicated region
      $region29: #{feed_forward_block.1} parent=5 // pred_check
        %p234 = pneg %p233
      $region30: #{feed_forward_block.1} parent=5 // pred_check_branch
        %236 = sbr.rel (%p234) target = $region32
      $region31: #{feed_forward_block.1} parent=5 // pred_region
        // Predicated region
        $region33: #{feed_forward_block.1} parent=31 // pred_check
          %p237 = pneg %p45
        $region34: #{feed_forward_block.1} parent=31 // pred_check_branch
          %239 = sbr.rel (%p237) target = $region36
        $region35: #{feed_forward_block.1} parent=31 // pred_region
          %p240 = scmp.lt.s32.totalorder %s20, 1
          %s241 = scalar_select %p240, %s20, 1
          %s242 = smul.addr %s241, 8
          %s243 = scalar_lea.vmem %s0, %s242
        $region36: #{feed_forward_block.1} parent=31 // pred_fallthru
          _
      $region32: #{feed_forward_block.1} parent=5 // pred_fallthru
        _
      %p244 = scmp.le.s32.totalorder 1, %s13
      %p245 = scmp.lt.s32.totalorder %s13, 3
      %p246 = pnand %p244, %p245
      %p247 = pneg %p246
      // Predicated region
      $region37: #{feed_forward_block.1} parent=5 // pred_check
        _
      $region38: #{feed_forward_block.1} parent=5 // pred_check_branch
        %249 = sbr.rel (%p246) target = $region40
      $region39: #{feed_forward_block.1} parent=5 // pred_region
        %s250 = ssub.s32 %s13, 1
        // Predicated region
        $region41: #{feed_forward_block.1} parent=39 // pred_check
          %p251 = pneg %p77
        $region42: #{feed_forward_block.1} parent=39 // pred_check_branch
          %253 = sbr.rel (%p251) target = $region44
        $region43: #{feed_forward_block.1} parent=39 // pred_region
          %255 = dma.done [#allocation3], 2048
        $region44: #{feed_forward_block.1} parent=39 // pred_fallthru
          _
        // Predicated region
        $region45: #{feed_forward_block.1} parent=39 // pred_check
          %p256 = pneg %p129
        $region46: #{feed_forward_block.1} parent=39 // pred_check_branch
          %258 = sbr.rel (%p256) target = $region48
        $region47: #{feed_forward_block.1} parent=39 // pred_region
          %260 = dma.done [#allocation5], 2048
        $region48: #{feed_forward_block.1} parent=39 // pred_fallthru
          _
        %p261 = scmp.lt.s32.totalorder %s22, 1
        %s262 = scalar_select %p261, %s22, 1
        %s263 = smul.addr %s262, 8
        %s264 = scalar_lea.vmem %s0, %s263
        %p265 = pneg %p51
        %p266 = pneg %p48
        %p267 = pneg %p77
        %p268 = pneg %p74
        %p269 = scmp.lt.s32.totalorder %s23, 0
        %s270 = scalar_select %p269, %s23, 0
        %s271 = scalar_lea.vmem %s2, %s270
        %p272 = pneg %p103
        %p273 = pneg %p100
        %p274 = pneg %p129
        %p275 = pneg %p126
        %p276 = pneg %p150
        %p277 = pneg %p147
        %p278 = pneg %p176
        %p279 = pneg %p173
        %p280 = scmp.lt.s32.totalorder %s22, 1
        %s281 = scalar_select %p280, %s22, 1
        %s282 = smul.addr %s281, 8
        %s283 = scalar_lea.vmem %s5, %s282
        %p284 = scmp.lt.s32.totalorder %s22, 1
        %s285 = scalar_select %p284, %s22, 1
        %s286 = smul.addr %s285, 8
        %s287 = scalar_lea.vmem %s0, %s286
        %p288 = scmp.lt.s32.totalorder %s23, 0
        %s289 = scalar_select %p288, %s23, 0
        %s290 = scalar_lea.vmem %s2, %s289
        %s291 = smul.u32 16, %s23
        %p292 = scmp.lt.s32.totalorder %s22, 1
        %s293 = scalar_select %p292, %s22, 1
        %s294 = smul.addr %s293, 8
        %s295 = scalar_lea.vmem %s5, %s294
        %v296 = vld [vmem:[%s287] sm:$0xff]
        %v297 = vld [vmem:[#allocation2] sm:$0xff]
        %v298 = vld [vmem:[#allocation2 + $0x8] sm:$0xff]
        %v299 = vld [vmem:[#allocation2 + $0x10] sm:$0xff]
        %v300 = vld [vmem:[#allocation2 + $0x18] sm:$0xff]
        %v301 = vld [vmem:[#allocation2 + $0x20] sm:$0xff]
        %v302 = vld [vmem:[#allocation2 + $0x28] sm:$0xff]
        %v303 = vld [vmem:[#allocation2 + $0x30] sm:$0xff]
        %v304 = vld [vmem:[#allocation2 + $0x38] sm:$0xff]
        %v305 = vld [vmem:[#allocation2 + $0x40] sm:$0xff]
        %v306 = vld [vmem:[#allocation2 + $0x48] sm:$0xff]
        %v307 = vld [vmem:[#allocation2 + $0x50] sm:$0xff]
        %v308 = vld [vmem:[#allocation2 + $0x58] sm:$0xff]
        %v309 = vld [vmem:[#allocation2 + $0x60] sm:$0xff]
        %v310 = vld [vmem:[#allocation2 + $0x68] sm:$0xff]
        %v311 = vld [vmem:[#allocation2 + $0x70] sm:$0xff]
        %v312 = vld [vmem:[#allocation2 + $0x78] sm:$0xff]
        %v313 = vld [vmem:[#allocation4] sm:$0xff]
        %v314 = vld [vmem:[#allocation4 + $0x8] sm:$0xff]
        %v315 = vld [vmem:[#allocation4 + $0x10] sm:$0xff]
        %v316 = vld [vmem:[#allocation4 + $0x18] sm:$0xff]
        %v317 = vld [vmem:[#allocation4 + $0x20] sm:$0xff]
        %v318 = vld [vmem:[#allocation4 + $0x28] sm:$0xff]
        %v319 = vld [vmem:[#allocation4 + $0x30] sm:$0xff]
        %v320 = vld [vmem:[#allocation4 + $0x38] sm:$0xff]
        %v321 = vld [vmem:[#allocation4 + $0x40] sm:$0xff]
        %v322 = vld [vmem:[#allocation4 + $0x48] sm:$0xff]
        %v323 = vld [vmem:[#allocation4 + $0x50] sm:$0xff]
        %v324 = vld [vmem:[#allocation4 + $0x58] sm:$0xff]
        %v325 = vld [vmem:[#allocation4 + $0x60] sm:$0xff]
        %v326 = vld [vmem:[#allocation4 + $0x68] sm:$0xff]
        %v327 = vld [vmem:[#allocation4 + $0x70] sm:$0xff]
        %v328 = vld [vmem:[#allocation4 + $0x78] sm:$0xff]
        %v329 = vld [vmem:[%s290] sm:$0x1]
        %v331 = vperm.slane %v329, 0
        %333 = vmatpush.msra.mxu0 %v312
        %334 = vmatpush.msra.mxu0 %v311
        %335 = vmatpush.msra.mxu0 %v310
        %336 = vmatpush.msra.mxu0 %v309
        %337 = vmatpush.msra.mxu0 %v308
        %338 = vmatpush.msra.mxu0 %v307
        %339 = vmatpush.msra.mxu0 %v306
        %340 = vmatpush.msra.mxu0 %v305
        %341 = vmatpush.msra.mxu0 %v304
        %342 = vmatpush.msra.mxu0 %v303
        %343 = vmatpush.msra.mxu0 %v302
        %344 = vmatpush.msra.mxu0 %v301
        %345 = vmatpush.msra.mxu0 %v300
        %346 = vmatpush.msra.mxu0 %v299
        %347 = vmatpush.msra.mxu0 %v298
        %348 = vmatpush.msra.mxu0 %v297
        %349 = vmatmul.f32.gmra.mxu0 %v296
        %v350 = vpop.f32.mrf.mxu0
        %v351 = vadd.f32 %v331, %v350
        %352 = vdwg.mxu0
        %v353 = vmul.f32 %v351, %v351
        %v354 = vmul.f32 %v351, 0.044715
        %v355 = vmul.f32 %v354, %v353
        %v356 = vadd.f32 %v351, %v355
        %v357 = vmul.f32 %v356, 0.7978846
        %v358 = vmax.f32 %v357, -50.0
        %v359 = vmin.f32 %v358, 50.0
        %v360 = vmul.f32 %v351, 0.5
        %v361 = vtanh.pop %v359
        %v362 = vadd.f32 %v361, 1.0
        %v363 = vmul.f32 %v360, %v362
        %364 = vmatpush.msra.mxu0 %v328
        %365 = vmatpush.msra.mxu0 %v327
        %366 = vmatpush.msra.mxu0 %v326
        %367 = vmatpush.msra.mxu0 %v325
        %368 = vmatpush.msra.mxu0 %v324
        %369 = vmatpush.msra.mxu0 %v323
        %370 = vmatpush.msra.mxu0 %v322
        %371 = vmatpush.msra.mxu0 %v321
        %372 = vmatpush.msra.mxu0 %v320
        %373 = vmatpush.msra.mxu0 %v319
        %374 = vmatpush.msra.mxu0 %v318
        %375 = vmatpush.msra.mxu0 %v317
        %376 = vmatpush.msra.mxu0 %v316
        %377 = vmatpush.msra.mxu0 %v315
        %378 = vmatpush.msra.mxu0 %v314
        %379 = vmatpush.msra.mxu0 %v313
        %380 = vmatmul.f32.gmra.mxu0 %v363
        %v381 = vpop.f32.mrf.mxu0
        %v382 = vadd.f32 0.0, %v381
        %383 = vdwg.mxu0
        %p384 = scmp.eq.s32.totalorder %s23, 0
        // Predicated region
        $region49: #{feed_forward_block.1} parent=39 // pred_check
          %p385 = pneg %p384
        $region50: #{feed_forward_block.1} parent=39 // pred_check_branch
          %387 = sbr.rel (%p385) target = $region52
        $region51: #{feed_forward_block.1} parent=39 // pred_region
          %v388 = vld [vmem:[%s4] sm:$0x1]
          %v390 = vperm.slane %v388, 0
          %v392 = vadd.f32 %v382, %v390
          %393 = vst [vmem:[%s295] sm:$0xff] %v392
        $region52: #{feed_forward_block.1} parent=39 // pred_fallthru
          _
        %p394 = scmp.ne.s32.totalorder %s23, 0
        // Predicated region
        $region53: #{feed_forward_block.1} parent=39 // pred_check
          %p395 = pneg %p394
        $region54: #{feed_forward_block.1} parent=39 // pred_check_branch
          %397 = sbr.rel (%p395) target = $region56
        $region55: #{feed_forward_block.1} parent=39 // pred_region
          %v398 = vld [vmem:[%s295] sm:$0xff]
          %v399 = vadd.f32 %v398, %v382
          %400 = vst [vmem:[%s295] sm:$0xff] %v399
        $region56: #{feed_forward_block.1} parent=39 // pred_fallthru
          _
        %p401 = scmp.lt.s32.totalorder %s22, 1
        %s402 = scalar_select %p401, %s22, 1
        %s403 = smul.addr %s402, 8
        %s404 = scalar_lea.vmem %s5, %s403
        // Predicated region
        $region57: #{feed_forward_block.1} parent=39 // pred_check
          %p405 = pneg %p173
        $region58: #{feed_forward_block.1} parent=39 // pred_check_branch
          %407 = sbr.rel (%p405) target = $region60
        $region59: #{feed_forward_block.1} parent=39 // pred_region
          _
        $region60: #{feed_forward_block.1} parent=39 // pred_fallthru
          _
      $region40: #{feed_forward_block.1} parent=5 // pred_fallthru
        _
      %p408 = scmp.le.s32.totalorder 2, %s13
      // Predicated region
      $region61: #{feed_forward_block.1} parent=5 // pred_check
        %p409 = pneg %p408
      $region62: #{feed_forward_block.1} parent=5 // pred_check_branch
        %411 = sbr.rel (%p409) target = $region64
      $region63: #{feed_forward_block.1} parent=5 // pred_region
        %s412 = ssub.s32 %s13, 2
        // Predicated region
        $region65: #{feed_forward_block.1} parent=63 // pred_check
          %p413 = pneg %p179
        $region66: #{feed_forward_block.1} parent=63 // pred_check_branch
          %415 = sbr.rel (%p413) target = $region68
        $region67: #{feed_forward_block.1} parent=63 // pred_region
          %p416 = scmp.lt.s32.totalorder %s24, 1
          %s417 = scalar_select %p416, %s24, 1
          %s418 = smul.addr %s417, 8
          %s419 = scalar_lea.vmem %s5, %s418
        $region68: #{feed_forward_block.1} parent=63 // pred_fallthru
          _
      $region64: #{feed_forward_block.1} parent=5 // pred_fallthru
        _
    $region6: #{feed_forward_block.1} parent=1 // loop_footer
      %s17 = sadd.s32 1, %s13
    $region7: #{feed_forward_block.1} parent=1 // loop_footer_branch
      %12 = sbr.rel target = $region3
    $region8: #{feed_forward_block.1} parent=1 // loop_exit
      _
    %420 = vsyncpa [#allocation3], 1
    %s421 = scalar_lea.sflag [#allocation3], 1
    %422 = vsyncpa %s421, 1
    %423 = vsyncpa [#allocation5], 1

</llo_original>
